<compile_context>
chip_gen: v5e
topology: v5e:2x2
jax: 0.10.0
libtpu: 0.0.40
codegen_flags: <defaults>
</compile_context>

<pallas_src>
import functools

import jax
import jax.numpy as jnp
from jax.experimental import pallas as pl
from jax.experimental.pallas import tpu as pltpu

LANE = 128                       # TPU lane width; all feature dims padded to this
IN_F, H1_F, H2_F = 120, 84, 56   # true (unpadded) layer widths


def _classifier_kernel(x_ref, w1_ref, b1_ref, w2_ref, b2_ref, w3_ref, b3_ref,
                       logits_ref, probs_ref):
    x = x_ref[...]                                              # (TB, 128) bf16

    # Linear(120 -> 84) + Tanh   (pad lanes stay exactly 0: tanh(0 + 0) = 0)
    h1 = jnp.dot(x, w1_ref[...], preferred_element_type=jnp.float32)
    h1 = jnp.tanh(h1 + b1_ref[...])                             # (TB, 128) f32

    # Linear(84 -> 56) + ReLU    (zero pad-rows of W2 kill the padded lanes of h1)
    h2 = jnp.dot(h1.astype(jnp.bfloat16), w2_ref[...],
                 preferred_element_type=jnp.float32)
    h2 = jnp.maximum(h2 + b2_ref[...], 0.0)                     # (TB, 128) f32

    # Linear(56 -> C)            (pad lanes of b3 are -1e30 -> softmax-neutral)
    logits = jnp.dot(h2.astype(jnp.bfloat16), w3_ref[...],
                     preferred_element_type=jnp.float32) + b3_ref[...]
    logits_ref[...] = logits                                    # (TB, 128) f32

    # numerically-stable softmax over lanes; pad lanes give exp(-huge) == 0
    m = jnp.max(logits, axis=1, keepdims=True)
    e = jnp.exp(logits - m)
    s = jnp.sum(e, axis=1, keepdims=True)
    probs_ref[...] = e * pl.reciprocal(s, approx=True)


def _round_up(n, m):
    return (n + m - 1) // m * m


@jax.jit
def classification_forward(x, w1, b1, w2, b2, w3, b3):
    """x: (B, 120) f32; weights stored as (in, out); biases as (1, out).

    Returns (logits, probs), both float32 of shape (B, n_classes)."""
    B = x.shape[0]
    C = w3.shape[1]

    # ---- lane-dense zero padding (mathematical no-op) + bf16 cast ----
    tile_b = min(2048, _round_up(B, 8))          # 8 <= tile_b <= 2048, sublane-aligned
    b_pad = _round_up(B, tile_b)

    xp = jnp.pad(x, ((0, b_pad - B), (0, LANE - IN_F))).astype(jnp.bfloat16)
    w1p = jnp.pad(w1, ((0, LANE - IN_F), (0, LANE - H1_F))).astype(jnp.bfloat16)
    w2p = jnp.pad(w2, ((0, LANE - H1_F), (0, LANE - H2_F))).astype(jnp.bfloat16)
    w3p = jnp.pad(w3, ((0, LANE - H2_F), (0, LANE - C))).astype(jnp.bfloat16)
    b1p = jnp.pad(b1, ((0, 0), (0, LANE - H1_F)))
    b2p = jnp.pad(b2, ((0, 0), (0, LANE - H2_F)))
    # pad logit lanes get -1e30 so they contribute exp(-huge) == 0 to the softmax
    b3p = jnp.pad(b3, ((0, 0), (0, LANE - C)), constant_values=-1e30)

    grid = (b_pad // tile_b,)
    row_spec = pl.BlockSpec((tile_b, LANE), lambda i: (i, 0))
    resident = lambda shape: pl.BlockSpec(shape, lambda i: (0, 0))  # VMEM-resident

    cost = pl.CostEstimate(
        flops=2 * b_pad * LANE * LANE * 3,
        transcendentals=2 * b_pad * LANE,              # tanh + exp
        bytes_accessed=(b_pad * LANE * 2               # x (bf16)
                        + 3 * LANE * LANE * 2          # weights (bf16)
                        + 3 * LANE * 4                 # biases (f32)
                        + 2 * b_pad * LANE * 4),       # logits + probs (f32)
    )

    logits_p, probs_p = pl.pallas_call(
        _classifier_kernel,
        out_shape=(
            jax.ShapeDtypeStruct((b_pad, LANE), jnp.float32),   # padded logits
            jax.ShapeDtypeStruct((b_pad, LANE), jnp.float32),   # padded probs
        ),
        grid=grid,
        in_specs=[
            row_spec,                                   # x tile (pipelined)
            resident((LANE, LANE)), resident((1, LANE)),  # W1, b1
            resident((LANE, LANE)), resident((1, LANE)),  # W2, b2
            resident((LANE, LANE)), resident((1, LANE)),  # W3, b3
        ],
        out_specs=(row_spec, row_spec),
        compiler_params=pltpu.CompilerParams(
            dimension_semantics=("parallel",)),         # megacore on v7x
        cost_estimate=cost,
    )(xp, w1p, b1p, w2p, b2p, w3p, b3p)

    return logits_p[:B, :C], probs_p[:B, :C]


def _init_linear(key, fan_in, fan_out):
    """Deterministic init mimicking torch.nn.Linear default (uniform +-1/sqrt(fan_in)).
    Weight is stored transposed as (fan_in, fan_out) so the kernel does x @ W."""
    kw, kb = jax.random.split(key)
    bound = 1.0 / jnp.sqrt(fan_in)
    w = jax.random.uniform(kw, (fan_in, fan_out), jnp.float32, -bound, bound)
    b = jax.random.uniform(kb, (1, fan_out), jnp.float32, -bound, bound)
    return w, b


if __name__ == "__main__":
    B = 8
    n_classes = 10

    root = jax.random.PRNGKey(0)
    kx, k1, k2, k3 = jax.random.split(root, 4)

    x = jax.random.normal(kx, (B, IN_F), jnp.float32)
    w1, b1 = _init_linear(k1, IN_F, H1_F)
    w2, b2 = _init_linear(k2, H1_F, H2_F)
    w3, b3 = _init_linear(k3, H2_F, n_classes)

    logits, probs = classification_forward(x, w1, b1, w2, b2, w3, b3)
    logits, probs = jax.block_until_ready((logits, probs))

    # --- reference matching the kernel numerics (bf16 MXU inputs, f32 accum) ---
    bf = jnp.bfloat16
    h1 = jnp.tanh(jnp.dot(x.astype(bf), w1.astype(bf),
                          preferred_element_type=jnp.float32) + b1)
    h2 = jnp.maximum(jnp.dot(h1.astype(bf), w2.astype(bf),
                             preferred_element_type=jnp.float32) + b2, 0.0)
    ref_logits = jnp.dot(h2.astype(bf), w3.astype(bf),
                         preferred_element_type=jnp.float32) + b3
    ref_probs = jax.nn.softmax(ref_logits, axis=1)
    assert jnp.allclose(logits, ref_logits, atol=2e-3, rtol=2e-3)
    assert jnp.allclose(probs, ref_probs, atol=5e-3, rtol=5e-3)

    # --- sanity vs. a pure-f32 reference (bf16 inputs bound the drift) ---
    h1f = jnp.tanh(x @ w1 + b1)
    h2f = jnp.maximum(h1f @ w2 + b2, 0.0)
    f32_logits = h2f @ w3 + b3
    assert jnp.allclose(logits, f32_logits, atol=5e-2, rtol=5e-2)
    assert jnp.allclose(jnp.sum(probs, axis=1), 1.0, atol=5e-3)

    print("KERNEL_OK")
</pallas_src>

<mosaic_0001>
module attributes {stable_mosaic.version = 11 : i64} {
  func.func @_classifier_kernel(%arg0: i32, %arg1: memref<8x128xbf16, #tpu.memory_space<vmem>>, %arg2: memref<128x128xbf16, #tpu.memory_space<vmem>>, %arg3: memref<1x128xf32, #tpu.memory_space<vmem>>, %arg4: memref<128x128xbf16, #tpu.memory_space<vmem>>, %arg5: memref<1x128xf32, #tpu.memory_space<vmem>>, %arg6: memref<128x128xbf16, #tpu.memory_space<vmem>>, %arg7: memref<1x128xf32, #tpu.memory_space<vmem>>, %arg8: memref<8x128xf32, #tpu.memory_space<vmem>>, %arg9: memref<8x128xf32, #tpu.memory_space<vmem>>) attributes {dimension_semantics = [#tpu.dimension_semantics<parallel>], iteration_bounds = array<i64: 1>, scalar_prefetch = 0 : i64, scratch_operands = 0 : i64, tpu.core_type = #tpu.core_type<tc>, window_params = [{transform_indices = @transform_0, window_bounds = array<i64: 8, 128>}, {pipeline_mode = #tpu.pipeline_mode<synchronous>, transform_indices = @transform_1, window_bounds = array<i64: 128, 128>}, {pipeline_mode = #tpu.pipeline_mode<synchronous>, transform_indices = @transform_2, window_bounds = array<i64: 1, 128>}, {pipeline_mode = #tpu.pipeline_mode<synchronous>, transform_indices = @transform_3, window_bounds = array<i64: 128, 128>}, {pipeline_mode = #tpu.pipeline_mode<synchronous>, transform_indices = @transform_4, window_bounds = array<i64: 1, 128>}, {pipeline_mode = #tpu.pipeline_mode<synchronous>, transform_indices = @transform_5, window_bounds = array<i64: 128, 128>}, {pipeline_mode = #tpu.pipeline_mode<synchronous>, transform_indices = @transform_6, window_bounds = array<i64: 1, 128>}, {transform_indices = @transform_7, window_bounds = array<i64: 8, 128>}, {transform_indices = @transform_8, window_bounds = array<i64: 8, 128>}]} {
    %c0 = arith.constant 0 : index
    %c0_0 = arith.constant 0 : index
    %0 = vector.load %arg1[%c0, %c0_0] : memref<8x128xbf16, #tpu.memory_space<vmem>>, vector<8x128xbf16>
    %c0_1 = arith.constant 0 : index
    %c0_2 = arith.constant 0 : index
    %1 = vector.load %arg2[%c0_1, %c0_2] : memref<128x128xbf16, #tpu.memory_space<vmem>>, vector<128x128xbf16>
    %cst = arith.constant dense<0.000000e+00> : vector<8x128xf32>
    %2 = tpu.matmul %0, %1, %cst {dimension_numbers = #tpu.dot_dimension_numbers<[1], [0], [0], [1], [0, 0, 1, 1], [], []>} : vector<8x128xbf16>, vector<128x128xbf16>, vector<8x128xf32> -> vector<8x128xf32>
    %c0_3 = arith.constant 0 : index
    %c0_4 = arith.constant 0 : index
    %3 = vector.load %arg3[%c0_3, %c0_4] : memref<1x128xf32, #tpu.memory_space<vmem>>, vector<1x128xf32>
    %4 = vector.broadcast %3 : vector<1x128xf32> to vector<8x128xf32>
    %5 = arith.addf %2, %4 : vector<8x128xf32>
    %6 = math.tanh %5 : vector<8x128xf32>
    %7 = arith.truncf %6 : vector<8x128xf32> to vector<8x128xbf16>
    %c0_5 = arith.constant 0 : index
    %c0_6 = arith.constant 0 : index
    %8 = vector.load %arg4[%c0_5, %c0_6] : memref<128x128xbf16, #tpu.memory_space<vmem>>, vector<128x128xbf16>
    %cst_7 = arith.constant dense<0.000000e+00> : vector<8x128xf32>
    %9 = tpu.matmul %7, %8, %cst_7 {dimension_numbers = #tpu.dot_dimension_numbers<[1], [0], [0], [1], [0, 0, 1, 1], [], []>} : vector<8x128xbf16>, vector<128x128xbf16>, vector<8x128xf32> -> vector<8x128xf32>
    %c0_8 = arith.constant 0 : index
    %c0_9 = arith.constant 0 : index
    %10 = vector.load %arg5[%c0_8, %c0_9] : memref<1x128xf32, #tpu.memory_space<vmem>>, vector<1x128xf32>
    %11 = vector.broadcast %10 : vector<1x128xf32> to vector<8x128xf32>
    %12 = arith.addf %9, %11 : vector<8x128xf32>
    %cst_10 = arith.constant 0.000000e+00 : f32
    %13 = vector.broadcast %cst_10 : f32 to vector<8x128xf32>
    %14 = arith.maximumf %12, %13 : vector<8x128xf32>
    %15 = arith.truncf %14 : vector<8x128xf32> to vector<8x128xbf16>
    %c0_11 = arith.constant 0 : index
    %c0_12 = arith.constant 0 : index
    %16 = vector.load %arg6[%c0_11, %c0_12] : memref<128x128xbf16, #tpu.memory_space<vmem>>, vector<128x128xbf16>
    %cst_13 = arith.constant dense<0.000000e+00> : vector<8x128xf32>
    %17 = tpu.matmul %15, %16, %cst_13 {dimension_numbers = #tpu.dot_dimension_numbers<[1], [0], [0], [1], [0, 0, 1, 1], [], []>} : vector<8x128xbf16>, vector<128x128xbf16>, vector<8x128xf32> -> vector<8x128xf32>
    %c0_14 = arith.constant 0 : index
    %c0_15 = arith.constant 0 : index
    %18 = vector.load %arg7[%c0_14, %c0_15] : memref<1x128xf32, #tpu.memory_space<vmem>>, vector<1x128xf32>
    %19 = vector.broadcast %18 : vector<1x128xf32> to vector<8x128xf32>
    %20 = arith.addf %17, %19 : vector<8x128xf32>
    %c0_16 = arith.constant 0 : index
    %c0_17 = arith.constant 0 : index
    %21 = vector.load %arg8[%c0_16, %c0_17] : memref<8x128xf32, #tpu.memory_space<vmem>>, vector<8x128xf32>
    tpu.vector_store %arg8[%c0_16, %c0_17], %20 {strides = array<i32>} : memref<8x128xf32, #tpu.memory_space<vmem>>, vector<8x128xf32>,
    %cst_18 = arith.constant dense<0xFF800000> : vector<8xf32>
    %22 = vector.multi_reduction <maximumf>, %20, %cst_18 [1] : vector<8x128xf32> to vector<8xf32>
    %23 = vector.shape_cast %22 : vector<8xf32> to vector<8x1xf32>
    %24 = vector.broadcast %23 : vector<8x1xf32> to vector<8x128xf32>
    %25 = arith.subf %20, %24 : vector<8x128xf32>
    %26 = math.exp %25 : vector<8x128xf32>
    %cst_19 = arith.constant dense<0.000000e+00> : vector<8xf32>
    %27 = vector.multi_reduction <add>, %26, %cst_19 [1] : vector<8x128xf32> to vector<8xf32>
    %28 = vector.shape_cast %27 : vector<8xf32> to vector<8x1xf32>
    %29 = tpu.reciprocal %28 {approx = true} : vector<8x1xf32> -> vector<8x1xf32>
    %30 = vector.broadcast %29 : vector<8x1xf32> to vector<8x128xf32>
    %31 = arith.mulf %26, %30 : vector<8x128xf32>
    %c0_20 = arith.constant 0 : index
    %c0_21 = arith.constant 0 : index
    %32 = vector.load %arg9[%c0_20, %c0_21] : memref<8x128xf32, #tpu.memory_space<vmem>>, vector<8x128xf32>
    tpu.vector_store %arg9[%c0_20, %c0_21], %31 {strides = array<i32>} : memref<8x128xf32, #tpu.memory_space<vmem>>, vector<8x128xf32>,
    return
  }
  func.func @transform_0(%arg0: i32) -> (i32, i32) {
    %c0_i32 = arith.constant 0 : i32
    %c0_i32_0 = arith.constant 0 : i32
    return %arg0, %c0_i32 : i32, i32
  }
  func.func @transform_1(%arg0: i32) -> (i32, i32) {
    %c0_i32 = arith.constant 0 : i32
    %c0_i32_0 = arith.constant 0 : i32
    %c0_i32_1 = arith.constant 0 : i32
    return %c0_i32, %c0_i32_0 : i32, i32
  }
  func.func @transform_2(%arg0: i32) -> (i32, i32) {
    %c0_i32 = arith.constant 0 : i32
    %c0_i32_0 = arith.constant 0 : i32
    %c0_i32_1 = arith.constant 0 : i32
    return %c0_i32, %c0_i32_0 : i32, i32
  }
  func.func @transform_3(%arg0: i32) -> (i32, i32) {
    %c0_i32 = arith.constant 0 : i32
    %c0_i32_0 = arith.constant 0 : i32
    %c0_i32_1 = arith.constant 0 : i32
    return %c0_i32, %c0_i32_0 : i32, i32
  }
  func.func @transform_4(%arg0: i32) -> (i32, i32) {
    %c0_i32 = arith.constant 0 : i32
    %c0_i32_0 = arith.constant 0 : i32
    %c0_i32_1 = arith.constant 0 : i32
    return %c0_i32, %c0_i32_0 : i32, i32
  }
  func.func @transform_5(%arg0: i32) -> (i32, i32) {
    %c0_i32 = arith.constant 0 : i32
    %c0_i32_0 = arith.constant 0 : i32
    %c0_i32_1 = arith.constant 0 : i32
    return %c0_i32, %c0_i32_0 : i32, i32
  }
  func.func @transform_6(%arg0: i32) -> (i32, i32) {
    %c0_i32 = arith.constant 0 : i32
    %c0_i32_0 = arith.constant 0 : i32
    %c0_i32_1 = arith.constant 0 : i32
    return %c0_i32, %c0_i32_0 : i32, i32
  }
  func.func @transform_7(%arg0: i32) -> (i32, i32) {
    %c0_i32 = arith.constant 0 : i32
    %c0_i32_0 = arith.constant 0 : i32
    return %arg0, %c0_i32 : i32, i32
  }
  func.func @transform_8(%arg0: i32) -> (i32, i32) {
    %c0_i32 = arith.constant 0 : i32
    %c0_i32_0 = arith.constant 0 : i32
    return %arg0, %c0_i32 : i32, i32
  }
}

</mosaic_0001>

<llo_original>
// kernel: classification_forward.1
$region0: #{classification_forward.1}
  #allocation0 [shape = 'u32[]', space=smem, size = 0x4, offset = 0x4, fixed_abs, tag = 'smem constant byte address 0x4 - core index']
  #allocation1 [shape = 'u32[72,128]{1,0:T(1,128)}', space=vmem, size = 0x9000, scoped, tag = 'internal scratch']
  %s0 = inlined_call_operand.vmem [shape: bf16[8,128], index: 0, kind: input, shape index: {}]
  %s1 = inlined_call_operand.vmem [shape: bf16[128,128], index: 1, kind: input, shape index: {}]
  %s2 = inlined_call_operand.vmem [shape: f32[1,128], index: 2, kind: input, shape index: {}]
  %s3 = inlined_call_operand.vmem [shape: bf16[128,128], index: 3, kind: input, shape index: {}]
  %s4 = inlined_call_operand.vmem [shape: f32[1,128], index: 4, kind: input, shape index: {}]
  %s5 = inlined_call_operand.vmem [shape: bf16[128,128], index: 5, kind: input, shape index: {}]
  %s6 = inlined_call_operand.vmem [shape: f32[1,128], index: 6, kind: input, shape index: {}]
  %s7 = inlined_call_operand.hbm [shape: f32[8,128], index: 7, kind: output, shape index: {0}]
  %s8 = inlined_call_operand.hbm [shape: f32[8,128], index: 8, kind: output, shape index: {1}]
  %9 = xla_tuple %s7, %s8
  %s10 = sld [smem:[#allocation0]]
  $region46: #{classification_forward.1} parent=0
    _
  %s12 = ssub.s32 1, %s10
  %s13 = scalar_select 0, %s12, %s10
  $region1: #{classification_forward.1} parent=0
    #allocation2 [shape = 'u8[4096]{0}', space=vmem, size = 0x1000, scoped, tag = 'output window, operand 0, single buffered']
    #allocation3 [shape = 's32[1]{0}', space=sflag, size = 0x4, scoped, tag = 'scoped memory for classification_forward.1']
    #allocation4 [shape = 'u8[4096]{0}', space=vmem, size = 0x1000, scoped, tag = 'output window, operand 1, single buffered']
    #allocation5 [shape = 's32[1]{0}', space=sflag, size = 0x4, scoped, tag = 'scoped memory for classification_forward.1']
    %14 = vsyncpa [#allocation3], 0
    %15 = vsyncpa [#allocation5], 0
    // Predicated region
    $region2: #{classification_forward.1} parent=1 // pred_check
      _
    $region3: #{classification_forward.1} parent=1 // pred_check_branch
      %17 = sbr.rel (0) target = $region5
    $region4: #{classification_forward.1} parent=1 // pred_region
      _
    $region5: #{classification_forward.1} parent=1 // pred_fallthru
      _
    // Predicated region
    $region6: #{classification_forward.1} parent=1 // pred_check
      _
    $region7: #{classification_forward.1} parent=1 // pred_check_branch
      %19 = sbr.rel (0) target = $region9
    $region8: #{classification_forward.1} parent=1 // pred_region
      _
    $region9: #{classification_forward.1} parent=1 // pred_fallthru
      _
    // Predicated region
    $region10: #{classification_forward.1} parent=1 // pred_check
      _
    $region11: #{classification_forward.1} parent=1 // pred_check_branch
      %21 = sbr.rel (0) target = $region13
    $region12: #{classification_forward.1} parent=1 // pred_region
      _
    $region13: #{classification_forward.1} parent=1 // pred_fallthru
      _
    // Predicated region
    $region14: #{classification_forward.1} parent=1 // pred_check
      _
    $region15: #{classification_forward.1} parent=1 // pred_check_branch
      %23 = sbr.rel (0) target = $region17
    $region16: #{classification_forward.1} parent=1 // pred_region
      _
    $region17: #{classification_forward.1} parent=1 // pred_fallthru
      _
    // Predicated region
    $region18: #{classification_forward.1} parent=1 // pred_check
      _
    $region19: #{classification_forward.1} parent=1 // pred_check_branch
      %25 = sbr.rel (0) target = $region21
    $region20: #{classification_forward.1} parent=1 // pred_region
      _
    $region21: #{classification_forward.1} parent=1 // pred_fallthru
      _
    // Predicated region
    $region22: #{classification_forward.1} parent=1 // pred_check
      _
    $region23: #{classification_forward.1} parent=1 // pred_check_branch
      %27 = sbr.rel (0) target = $region25
    $region24: #{classification_forward.1} parent=1 // pred_region
      _
    $region25: #{classification_forward.1} parent=1 // pred_fallthru
      _
    // Predicated region
    $region26: #{classification_forward.1} parent=1 // pred_check
      _
    $region27: #{classification_forward.1} parent=1 // pred_check_branch
      %29 = sbr.rel (0) target = $region29
    $region28: #{classification_forward.1} parent=1 // pred_region
      _
    $region29: #{classification_forward.1} parent=1 // pred_fallthru
      _
    %v30 = vld [vmem:[%s0] sm:$0xf]
    %v31 = vld [vmem:[%s1] sm:$0xf]
    %v32 = vld [vmem:[%s1 + $0x4] sm:$0xf]
    %v33 = vld [vmem:[%s1 + $0x8] sm:$0xf]
    %v34 = vld [vmem:[%s1 + $0xc] sm:$0xf]
    %v35 = vld [vmem:[%s1 + $0x10] sm:$0xf]
    %v36 = vld [vmem:[%s1 + $0x14] sm:$0xf]
    %v37 = vld [vmem:[%s1 + $0x18] sm:$0xf]
    %v38 = vld [vmem:[%s1 + $0x1c] sm:$0xf]
    %v39 = vld [vmem:[%s1 + $0x20] sm:$0xf]
    %v40 = vld [vmem:[%s1 + $0x24] sm:$0xf]
    %v41 = vld [vmem:[%s1 + $0x28] sm:$0xf]
    %v42 = vld [vmem:[%s1 + $0x2c] sm:$0xf]
    %v43 = vld [vmem:[%s1 + $0x30] sm:$0xf]
    %v44 = vld [vmem:[%s1 + $0x34] sm:$0xf]
    %v45 = vld [vmem:[%s1 + $0x38] sm:$0xf]
    %v46 = vld [vmem:[%s1 + $0x3c] sm:$0xf]
    %v47 = vld [vmem:[%s2] sm:$0x1]
    %v49 = vperm.slane %v47, 0
    %v67 = vunpack.c.l.b16 %v31
    %v68 = vunpack.c.l.b16 %v32
    %v69 = vunpack.c.l.b16 %v33
    %v70 = vunpack.c.l.b16 %v34
    %v71 = vunpack.c.l.b16 %v35
    %v72 = vunpack.c.l.b16 %v36
    %v73 = vunpack.c.l.b16 %v37
    %v74 = vunpack.c.l.b16 %v38
    %v75 = vunpack.c.l.b16 %v39
    %v76 = vunpack.c.l.b16 %v40
    %v77 = vunpack.c.l.b16 %v41
    %v78 = vunpack.c.l.b16 %v42
    %v79 = vunpack.c.l.b16 %v43
    %v80 = vunpack.c.l.b16 %v44
    %v81 = vunpack.c.l.b16 %v45
    %v82 = vunpack.c.l.b16 %v46
    %v83 = vpack.c.b16 %v68, %v67
    %v84 = vpack.c.b16 %v70, %v69
    %v85 = vpack.c.b16 %v72, %v71
    %v86 = vpack.c.b16 %v74, %v73
    %v87 = vpack.c.b16 %v76, %v75
    %v88 = vpack.c.b16 %v78, %v77
    %v89 = vpack.c.b16 %v80, %v79
    %v90 = vpack.c.b16 %v82, %v81
    %99 = vmatpush.bf16.msra.mxu0 %v90
    %100 = vmatpush.bf16.msra.mxu0 %v89
    %101 = vmatpush.bf16.msra.mxu0 %v88
    %102 = vmatpush.bf16.msra.mxu0 %v87
    %103 = vmatpush.bf16.msra.mxu0 %v86
    %104 = vmatpush.bf16.msra.mxu0 %v85
    %105 = vmatpush.bf16.msra.mxu0 %v84
    %106 = vmatpush.bf16.msra.mxu0 %v83
    %107 = vmatmul.bf16.gmra.mxu0 %v30
    %v108 = vpop.f32.mrf.mxu0
    %v109 = vadd.f32 %v49, %v108
    %v110 = vpop.f32.mrf.mxu0
    %111 = vdwg.mxu0
    %v112 = vtanh.pop %v109
    %v113 = vpack.c.bf16 %v112, %v112
    %v114 = vld [vmem:[%s3] sm:$0xf]
    %v115 = vld [vmem:[%s3 + $0x4] sm:$0xf]
    %v116 = vld [vmem:[%s3 + $0x8] sm:$0xf]
    %v117 = vld [vmem:[%s3 + $0xc] sm:$0xf]
    %v118 = vld [vmem:[%s3 + $0x10] sm:$0xf]
    %v119 = vld [vmem:[%s3 + $0x14] sm:$0xf]
    %v120 = vld [vmem:[%s3 + $0x18] sm:$0xf]
    %v121 = vld [vmem:[%s3 + $0x1c] sm:$0xf]
    %v122 = vld [vmem:[%s3 + $0x20] sm:$0xf]
    %v123 = vld [vmem:[%s3 + $0x24] sm:$0xf]
    %v124 = vld [vmem:[%s3 + $0x28] sm:$0xf]
    %v125 = vld [vmem:[%s3 + $0x2c] sm:$0xf]
    %v126 = vld [vmem:[%s3 + $0x30] sm:$0xf]
    %v127 = vld [vmem:[%s3 + $0x34] sm:$0xf]
    %v128 = vld [vmem:[%s3 + $0x38] sm:$0xf]
    %v129 = vld [vmem:[%s3 + $0x3c] sm:$0xf]
    %v130 = vld [vmem:[%s4] sm:$0x1]
    %v132 = vperm.slane %v130, 0
    %v150 = vunpack.c.l.b16 %v114
    %v151 = vunpack.c.l.b16 %v115
    %v152 = vunpack.c.l.b16 %v116
    %v153 = vunpack.c.l.b16 %v117
    %v154 = vunpack.c.l.b16 %v118
    %v155 = vunpack.c.l.b16 %v119
    %v156 = vunpack.c.l.b16 %v120
    %v157 = vunpack.c.l.b16 %v121
    %v158 = vunpack.c.l.b16 %v122
    %v159 = vunpack.c.l.b16 %v123
    %v160 = vunpack.c.l.b16 %v124
    %v161 = vunpack.c.l.b16 %v125
    %v162 = vunpack.c.l.b16 %v126
    %v163 = vunpack.c.l.b16 %v127
    %v164 = vunpack.c.l.b16 %v128
    %v165 = vunpack.c.l.b16 %v129
    %v166 = vpack.c.b16 %v151, %v150
    %v167 = vpack.c.b16 %v153, %v152
    %v168 = vpack.c.b16 %v155, %v154
    %v169 = vpack.c.b16 %v157, %v156
    %v170 = vpack.c.b16 %v159, %v158
    %v171 = vpack.c.b16 %v161, %v160
    %v172 = vpack.c.b16 %v163, %v162
    %v173 = vpack.c.b16 %v165, %v164
    %182 = vmatpush.bf16.msra.mxu0 %v173
    %183 = vmatpush.bf16.msra.mxu0 %v172
    %184 = vmatpush.bf16.msra.mxu0 %v171
    %185 = vmatpush.bf16.msra.mxu0 %v170
    %186 = vmatpush.bf16.msra.mxu0 %v169
    %187 = vmatpush.bf16.msra.mxu0 %v168
    %188 = vmatpush.bf16.msra.mxu0 %v167
    %189 = vmatpush.bf16.msra.mxu0 %v166
    %190 = vmatmul.bf16.gmra.mxu0 %v113
    %v191 = vpop.f32.mrf.mxu0
    %v192 = vadd.f32 %v132, %v191
    %v193 = vpop.f32.mrf.mxu0
    %194 = vdwg.mxu0
    %v195 = vmax.f32 %v192, 0.0
    %v196 = vpack.c.bf16 %v195, %v195
    %v197 = vld [vmem:[%s5] sm:$0xf]
    %v198 = vld [vmem:[%s5 + $0x4] sm:$0xf]
    %v199 = vld [vmem:[%s5 + $0x8] sm:$0xf]
    %v200 = vld [vmem:[%s5 + $0xc] sm:$0xf]
    %v201 = vld [vmem:[%s5 + $0x10] sm:$0xf]
    %v202 = vld [vmem:[%s5 + $0x14] sm:$0xf]
    %v203 = vld [vmem:[%s5 + $0x18] sm:$0xf]
    %v204 = vld [vmem:[%s5 + $0x1c] sm:$0xf]
    %v205 = vld [vmem:[%s5 + $0x20] sm:$0xf]
    %v206 = vld [vmem:[%s5 + $0x24] sm:$0xf]
    %v207 = vld [vmem:[%s5 + $0x28] sm:$0xf]
    %v208 = vld [vmem:[%s5 + $0x2c] sm:$0xf]
    %v209 = vld [vmem:[%s5 + $0x30] sm:$0xf]
    %v210 = vld [vmem:[%s5 + $0x34] sm:$0xf]
    %v211 = vld [vmem:[%s5 + $0x38] sm:$0xf]
    %v212 = vld [vmem:[%s5 + $0x3c] sm:$0xf]
    %v213 = vld [vmem:[%s6] sm:$0x1]
    %v215 = vperm.slane %v213, 0
    %v233 = vunpack.c.l.b16 %v197
    %v234 = vunpack.c.l.b16 %v198
    %v235 = vunpack.c.l.b16 %v199
    %v236 = vunpack.c.l.b16 %v200
    %v237 = vunpack.c.l.b16 %v201
    %v238 = vunpack.c.l.b16 %v202
    %v239 = vunpack.c.l.b16 %v203
    %v240 = vunpack.c.l.b16 %v204
    %v241 = vunpack.c.l.b16 %v205
    %v242 = vunpack.c.l.b16 %v206
    %v243 = vunpack.c.l.b16 %v207
    %v244 = vunpack.c.l.b16 %v208
    %v245 = vunpack.c.l.b16 %v209
    %v246 = vunpack.c.l.b16 %v210
    %v247 = vunpack.c.l.b16 %v211
    %v248 = vunpack.c.l.b16 %v212
    %v249 = vpack.c.b16 %v234, %v233
    %v250 = vpack.c.b16 %v236, %v235
    %v251 = vpack.c.b16 %v238, %v237
    %v252 = vpack.c.b16 %v240, %v239
    %v253 = vpack.c.b16 %v242, %v241
    %v254 = vpack.c.b16 %v244, %v243
    %v255 = vpack.c.b16 %v246, %v245
    %v256 = vpack.c.b16 %v248, %v247
    %265 = vmatpush.bf16.msra.mxu0 %v256
    %266 = vmatpush.bf16.msra.mxu0 %v255
    %267 = vmatpush.bf16.msra.mxu0 %v254
    %268 = vmatpush.bf16.msra.mxu0 %v253
    %269 = vmatpush.bf16.msra.mxu0 %v252
    %270 = vmatpush.bf16.msra.mxu0 %v251
    %271 = vmatpush.bf16.msra.mxu0 %v250
    %272 = vmatpush.bf16.msra.mxu0 %v249
    %273 = vmatmul.bf16.gmra.mxu0 %v196
    %v274 = vpop.f32.mrf.mxu0
    %v275 = vadd.f32 %v215, %v274
    %v276 = vpop.f32.mrf.mxu0
    %277 = vdwg.mxu0
    %278 = vst [vmem:[#allocation2] sm:$0xff] %v275
    %279 = vmax.xlane.f32.xlu0 %v275
    %v280 = vpop.xlane.xlu0 %279
    %v281 = vsub.f32 %v275, %v280
    %v282 = vmul.f32 %v281, 1.442695
    %v283 = vpow.pop %v282
    %284 = vadd.xlane.f32.xlu0 %v283
    %v285 = vpop.xlane.xlu0 %284
    %v286 = vrcp.pop %v285
    %v287 = vmul.f32 %v283, %v286
    %288 = vst [vmem:[#allocation4] sm:$0xff] %v287
    // Predicated region
    $region30: #{classification_forward.1} parent=1 // pred_check
      _
    $region31: #{classification_forward.1} parent=1 // pred_check_branch
      %290 = sbr.rel (0) target = $region33
    $region32: #{classification_forward.1} parent=1 // pred_region
      %292 = vsyncadd [#allocation3], 0
      %s294 = sshll.u32 [#allocation2], 4
      %s295 = int_to_ptr.vmem [resolvable:$true] %s294
      %s296 = sshll.u32 %s7, 4
      %s297 = int_to_ptr.hbm [resolvable:$true] %s296
      %299 = dma.vmem_to_hbm [thread:$0]  %s295, 128, %s297, [#allocation3]
    $region33: #{classification_forward.1} parent=1 // pred_fallthru
      _
    // Predicated region
    $region34: #{classification_forward.1} parent=1 // pred_check
      _
    $region35: #{classification_forward.1} parent=1 // pred_check_branch
      %301 = sbr.rel (0) target = $region37
    $region36: #{classification_forward.1} parent=1 // pred_region
      %303 = vsyncadd [#allocation5], 0
      %s305 = sshll.u32 [#allocation4], 4
      %s306 = int_to_ptr.vmem [resolvable:$true] %s305
      %s307 = sshll.u32 %s8, 4
      %s308 = int_to_ptr.hbm [resolvable:$true] %s307
      %310 = dma.vmem_to_hbm [thread:$0]  %s306, 128, %s308, [#allocation5]
    $region37: #{classification_forward.1} parent=1 // pred_fallthru
      _
    // Predicated region
    $region38: #{classification_forward.1} parent=1 // pred_check
      _
    $region39: #{classification_forward.1} parent=1 // pred_check_branch
      %312 = sbr.rel (0) target = $region41
    $region40: #{classification_forward.1} parent=1 // pred_region
      %314 = dma.done [#allocation3], 128
    $region41: #{classification_forward.1} parent=1 // pred_fallthru
      _
    // Predicated region
    $region42: #{classification_forward.1} parent=1 // pred_check
      _
    $region43: #{classification_forward.1} parent=1 // pred_check_branch
      %316 = sbr.rel (0) target = $region45
    $region44: #{classification_forward.1} parent=1 // pred_region
      %318 = dma.done [#allocation5], 128
    $region45: #{classification_forward.1} parent=1 // pred_fallthru
      _
    %319 = vsyncpa [#allocation3], 1
    %320 = vsyncpa [#allocation5], 1

</llo_original>
